<compile_context>
chip_gen: v7x
topology: tpu7x:2x2x1
jax: 0.10.0
libtpu: 0.0.40
codegen_flags: <defaults>
</compile_context>

<pallas_src>
import functools

import jax
import jax.numpy as jnp
from jax.experimental import pallas as pl
from jax.experimental.pallas import tpu as pltpu

_LANE = 128


def _rmsnorm_kernel(x_ref, w_ref, o_ref, *, eps, inv_dim):
    # x_ref: (tile_rows, dim_p), w_ref: (1, dim_p), o_ref: (tile_rows, dim_p)
    # Partial last blocks: padded rows hold whatever Pallas supplies; the math
    # is strictly per-row and the writeback is masked, so this is safe.  Do
    # NOT introduce cross-row reuse here.
    x = x_ref[...]
    xf = x if x.dtype == jnp.float32 else x.astype(jnp.float32)   # x.float()
    # x.pow(2).mean(-1): sum (XLU reduce) * compile-time 1/dim; padded lanes
    # are zero so the true (unpadded) dim is the correct divisor.
    ms = jnp.sum(xf * xf, axis=-1, keepdims=True) * inv_dim
    inv = jax.lax.rsqrt(ms + eps)                                  # torch.rsqrt (EUP)
    normed = xf * inv
    if x.dtype != jnp.float32:
        normed = normed.astype(x.dtype)                            # .type_as(x) BEFORE weight mul
    o_ref[...] = (normed * w_ref[...]).astype(o_ref.dtype)         # * self.weight


def _sublane_multiple(itemsize):
    # Keep packed vregs full: 8 rows for 4-byte, 16 for 2-byte, 32 for 1-byte.
    return {1: 32, 2: 16}.get(itemsize, 8)


def _tpu_info():
    try:
        return pltpu.get_tpu_info()
    except Exception:
        return None


def _physical_vmem_bytes():
    info = _tpu_info()
    if info is not None:
        for name in ("vmem_capacity_bytes", "vmem_bytes", "vmem_size_bytes"):
            v = getattr(info, name, None)
            if v:
                return int(v)
    return 64 * 1024 * 1024  # conservative: v7x per-TensorCore VMEM


def _num_tensorcores():
    info = _tpu_info()
    if info is not None:
        for name in ("num_cores", "num_tensorcores", "tensorcore_count",
                     "cores_per_chip"):
            v = getattr(info, name, None)
            if v:
                return int(v)
    return 1  # v5e / v6e


def _choose_tiling(rows, dim_p, x_bytes, out_bytes):
    """Returns (row_tile, vmem_limit_bytes)."""
    sub = _sublane_multiple(x_bytes)
    n_cores = _num_tensorcores()
    phys = _physical_vmem_bytes()

    row_x_bytes = dim_p * x_bytes
    # Per-row VMEM: double-buffered input + output tiles + f32 upcast temps.
    row_tile_bytes = dim_p * (2 * x_bytes + 2 * out_bytes + 2 * 4)

    target_x_tile = 4 << 20    # ~4 MiB of x per block: pipeline roofline plateau
    footprint_cap = 12 << 20   # per-tile footprint cap (headroom on v7x's 64 MiB)

    cap = min(target_x_tile // row_x_bytes, footprint_cap // row_tile_bytes)
    cap = int(max(sub, (cap // sub) * sub))

    total_x_bytes = rows * row_x_bytes
    if total_x_bytes > (2 << 20):
        # Enough steps that read(i+1)/compute(i)/write(i-1) overlap; on
        # megacore each TC should still double-buffer within its half.
        min_steps = 8 if n_cores >= 2 else 4
    else:
        min_steps = 2 if (n_cores >= 2 and rows >= 2 * sub) else 1

    if rows <= sub:
        tr = rows  # tiny input: single full-rows block (no divisibility constraint)
    else:
        steps = max(pl.cdiv(rows, cap), min_steps)
        tr = -(-rows // steps)                    # ceil
        tr = max(sub, (tr // sub) * sub)          # round down to sublane multiple
        tr = min(tr, cap)
        # Best-effort: even grid on megacore so both TensorCores get equal work.
        grid = pl.cdiv(rows, tr)
        if n_cores >= 2 and grid > 1 and grid % 2 == 1:
            for cand in (tr - sub, tr + sub):
                if sub <= cand <= cap:
                    g2 = pl.cdiv(rows, cand)
                    if g2 > 1 and g2 % 2 == 0:
                        tr = cand
                        break

    tile_vmem = tr * row_tile_bytes + 2 * dim_p * max(x_bytes, 4)  # + resident weight
    vmem_limit = int(min(phys * 3 // 4, max(32 << 20, 2 * tile_vmem)))
    return tr, vmem_limit


def rmsnorm(x, weight, eps=1e-6, tile_rows=None, out_dtype=None):
    """RMSNorm over the last axis of x. weight has shape (dim,).

    out_dtype=None matches PyTorch promotion (result_type(x, weight)); pass
    x.dtype explicitly to keep bf16 writeback with an f32 weight.
    """
    orig_shape = x.shape
    dim = orig_shape[-1]
    rows = 1
    for s in orig_shape[:-1]:
        rows *= s

    if out_dtype is None:
        out_dtype = jnp.result_type(x.dtype, weight.dtype)
    x_bytes = jnp.dtype(x.dtype).itemsize
    out_bytes = jnp.dtype(out_dtype).itemsize
    w_bytes = jnp.dtype(weight.dtype).itemsize
    sub = _sublane_multiple(x_bytes)

    # Lane-dense blocks: pad dim up to a multiple of 128 (zeros don't perturb
    # the sum; true dim is the mean divisor; padded lanes are sliced off).
    dim_p = dim if dim % _LANE == 0 else ((dim + _LANE - 1) // _LANE) * _LANE

    auto_tr, vmem_limit = _choose_tiling(rows, dim_p, x_bytes, out_bytes)
    if tile_rows is None:
        tr = auto_tr
    else:
        tr = min(rows, int(tile_rows))
        if tr < rows:
            tr = max(sub, (tr // sub) * sub)  # keep sublane-aligned blocks

    grid = (pl.cdiv(rows, tr),)  # partial last block is masked by Pallas

    x2d = x.reshape(rows, dim)
    w2d = weight.reshape(1, dim)
    if dim_p != dim:
        x2d = jnp.pad(x2d, ((0, 0), (0, dim_p - dim)))
        w2d = jnp.pad(w2d, ((0, 0), (0, dim_p - dim)))

    cost = pl.CostEstimate(
        flops=4 * rows * dim_p,
        transcendentals=rows,
        bytes_accessed=rows * dim_p * (x_bytes + out_bytes) + dim_p * w_bytes,
    )

    out = pl.pallas_call(
        functools.partial(_rmsnorm_kernel, eps=eps, inv_dim=1.0 / dim),
        out_shape=jax.ShapeDtypeStruct((rows, dim_p), out_dtype),
        grid_spec=pltpu.PrefetchScalarGridSpec(
            num_scalar_prefetch=0,
            grid=grid,
            in_specs=[
                pl.BlockSpec((tr, dim_p), lambda i: (i, 0)),  # x row tile
                pl.BlockSpec((1, dim_p), lambda i: (0, 0)),   # weight, resident
            ],
            out_specs=pl.BlockSpec((tr, dim_p), lambda i: (i, 0)),
        ),
        compiler_params=pltpu.CompilerParams(
            dimension_semantics=("parallel",),
            vmem_limit_bytes=vmem_limit,
        ),
        cost_estimate=cost,
    )(x2d, w2d)

    if dim_p != dim:
        out = out[:, :dim]
    return out.reshape(orig_shape)


if __name__ == "__main__":
    key = jax.random.PRNGKey(0)
    batch, seq, hidden = 2, 8, 32

    x = jax.random.normal(key, (batch, seq, hidden), dtype=jnp.float32)
    # Deterministic parameter init: RMSNorm weight initialized to ones
    # (matches nn.Parameter(torch.ones(dim))).
    weight = jnp.ones((hidden,), dtype=jnp.float32)
    eps = 1e-6

    out = rmsnorm(x, weight, eps=eps)
    out = jax.block_until_ready(out)

    # Reference check in plain JAX (same op order as the PyTorch module).
    xf = x.astype(jnp.float32)
    ref = (xf * jax.lax.rsqrt(jnp.mean(xf * xf, axis=-1, keepdims=True) + eps)
           ).astype(x.dtype) * weight
    assert out.shape == x.shape and out.dtype == x.dtype
    assert jnp.allclose(out, ref, atol=1e-5, rtol=1e-5)

    print("KERNEL_OK")
</pallas_src>

<mosaic_0001>
module attributes {stable_mosaic.version = 11 : i64} {
  func.func @_rmsnorm_kernel(%arg0: i32, %arg1: memref<16x128xf32, #tpu.memory_space<vmem>>, %arg2: memref<1x128xf32, #tpu.memory_space<vmem>>, %arg3: memref<16x128xf32, #tpu.memory_space<vmem>>) attributes {dimension_semantics = [#tpu.dimension_semantics<parallel>], iteration_bounds = array<i64: 1>, scalar_prefetch = 0 : i64, scratch_operands = 0 : i64, tpu.core_type = #tpu.core_type<tc>, window_params = [{transform_indices = @transform_0, window_bounds = array<i64: 16, 128>}, {pipeline_mode = #tpu.pipeline_mode<synchronous>, transform_indices = @transform_1, window_bounds = array<i64: 1, 128>}, {transform_indices = @transform_2, window_bounds = array<i64: 16, 128>}]} {
    %c0 = arith.constant 0 : index
    %c0_0 = arith.constant 0 : index
    %0 = vector.load %arg1[%c0, %c0_0] : memref<16x128xf32, #tpu.memory_space<vmem>>, vector<16x128xf32>
    %1 = arith.mulf %0, %0 : vector<16x128xf32>
    %cst = arith.constant dense<0.000000e+00> : vector<16xf32>
    %2 = vector.multi_reduction <add>, %1, %cst [1] : vector<16x128xf32> to vector<16xf32>
    %3 = vector.shape_cast %2 : vector<16xf32> to vector<16x1xf32>
    %cst_1 = arith.constant 3.125000e-02 : f32
    %4 = vector.broadcast %cst_1 : f32 to vector<16x1xf32>
    %5 = arith.mulf %3, %4 : vector<16x1xf32>
    %cst_2 = arith.constant 9.99999997E-7 : f32
    %6 = vector.broadcast %cst_2 : f32 to vector<16x1xf32>
    %7 = arith.addf %5, %6 : vector<16x1xf32>
    %8 = math.rsqrt %7 : vector<16x1xf32>
    %9 = vector.broadcast %8 : vector<16x1xf32> to vector<16x128xf32>
    %10 = arith.mulf %0, %9 : vector<16x128xf32>
    %c0_3 = arith.constant 0 : index
    %c0_4 = arith.constant 0 : index
    %11 = vector.load %arg2[%c0_3, %c0_4] : memref<1x128xf32, #tpu.memory_space<vmem>>, vector<1x128xf32>
    %12 = vector.broadcast %11 : vector<1x128xf32> to vector<16x128xf32>
    %13 = arith.mulf %10, %12 : vector<16x128xf32>
    %c0_5 = arith.constant 0 : index
    %c0_6 = arith.constant 0 : index
    %14 = vector.load %arg3[%c0_5, %c0_6] : memref<16x128xf32, #tpu.memory_space<vmem>>, vector<16x128xf32>
    tpu.vector_store %arg3[%c0_5, %c0_6], %13 {strides = array<i32>} : memref<16x128xf32, #tpu.memory_space<vmem>>, vector<16x128xf32>,
    return
  }
  func.func @transform_0(%arg0: i32) -> (i32, i32) {
    %c0_i32 = arith.constant 0 : i32
    %c0_i32_0 = arith.constant 0 : i32
    return %arg0, %c0_i32 : i32, i32
  }
  func.func @transform_1(%arg0: i32) -> (i32, i32) {
    %c0_i32 = arith.constant 0 : i32
    %c0_i32_0 = arith.constant 0 : i32
    %c0_i32_1 = arith.constant 0 : i32
    return %c0_i32, %c0_i32_0 : i32, i32
  }
  func.func @transform_2(%arg0: i32) -> (i32, i32) {
    %c0_i32 = arith.constant 0 : i32
    %c0_i32_0 = arith.constant 0 : i32
    return %arg0, %c0_i32 : i32, i32
  }
}

</mosaic_0001>

<llo_original>
// kernel: tpu_custom_call.1
$region0: #{tpu_custom_call.1}
  #allocation0 [shape = 'u32[]', space=smem, size = 0x4, offset = 0x4, fixed_abs, tag = 'smem constant byte address 0x4 - core index']
  #allocation1 [shape = 'u32[144,128]{1,0:T(1,128)}', space=vmem, size = 0x12000, scoped, tag = 'internal scratch']
  %s0 = inlined_call_operand.hbm [shape: f32[16,128], index: 0, kind: input, shape index: {}]
  %s1 = inlined_call_operand.vmem [shape: f32[1,128], index: 1, kind: input, shape index: {}]
  %s2 = inlined_call_operand.hbm [shape: f32[16,128], index: 2, kind: output, shape index: {}]
  %s3 = sld [smem:[#allocation0]]
  $region22: #{tpu_custom_call.1} parent=0
    _
  %s5 = ssub.s32 1, %s3
  %s6 = scalar_select 0, %s5, %s3
  $region1: #{tpu_custom_call.1} parent=0
    #allocation2 [shape = 'u8[8192]{0}', space=vmem, size = 0x2000, scoped, tag = 'input window, operand 0, single buffered']
    #allocation3 [shape = 's32[1]{0}', space=sflag, size = 0x4, scoped, tag = 'scoped memory for tpu_custom_call.1']
    #allocation4 [shape = 's32[1]{0}', space=sflag, size = 0x4, scoped, tag = 'scoped memory for tpu_custom_call.1']
    #allocation5 [shape = 'u8[8192]{0}', space=vmem, size = 0x2000, scoped, tag = 'output window, operand 0, single buffered']
    %7 = vsyncpa [#allocation3], 0
    %8 = vsyncpa [#allocation4], 0
    // Predicated region
    $region2: #{tpu_custom_call.1} parent=1 // pred_check
      _
    $region3: #{tpu_custom_call.1} parent=1 // pred_check_branch
      %10 = sbr.rel (0) target = $region5
    $region4: #{tpu_custom_call.1} parent=1 // pred_region
      %s12 = ssub.s32 256, 256
      %13 = vsyncadd [#allocation3], %s12
      %s14 = sshll.u32 [#allocation2], 4
      %s15 = int_to_ptr.vmem [resolvable:$true] %s14
      %20 = dma.hbm_to_vmem [thread:$0]  %s0, 256, %s15, [#allocation3], 128, 128, 8
    $region5: #{tpu_custom_call.1} parent=1 // pred_fallthru
      _
    // Predicated region
    $region6: #{tpu_custom_call.1} parent=1 // pred_check
      _
    $region7: #{tpu_custom_call.1} parent=1 // pred_check_branch
      %22 = sbr.rel (0) target = $region9
    $region8: #{tpu_custom_call.1} parent=1 // pred_region
      _
    $region9: #{tpu_custom_call.1} parent=1 // pred_fallthru
      _
    // Predicated region
    $region10: #{tpu_custom_call.1} parent=1 // pred_check
      _
    $region11: #{tpu_custom_call.1} parent=1 // pred_check_branch
      %24 = sbr.rel (0) target = $region13
    $region12: #{tpu_custom_call.1} parent=1 // pred_region
      %25 = dma.done [#allocation3], 256
    $region13: #{tpu_custom_call.1} parent=1 // pred_fallthru
      _
    %v26 = vld [vmem:[#allocation2] sm:$0xff]
    %v27 = vld [vmem:[#allocation2 + $0x8] sm:$0xff]
    %v28 = vmul.f32 %v26, %v26
    %v29 = vmul.f32 %v27, %v27
    %30 = vadd.xlane.f32.xlu0 %v28
    %v31 = vpop.xlane.xlu0 %30
    %32 = vadd.xlane.f32.xlu0 %v29
    %v33 = vpop.xlane.xlu0 %32
    %v34 = vmul.f32 %v31, 0.03125
    %v35 = vmul.f32 %v33, 0.03125
    %v36 = vadd.f32 %v34, 1e-06
    %v37 = vadd.f32 %v35, 1e-06
    %v38 = vrsqrt.pop %v36
    %v39 = vrsqrt.pop %v37
    %v40 = vmul.f32 %v26, %v38
    %v41 = vmul.f32 %v27, %v39
    %v42 = vld [vmem:[%s1] sm:$0x1]
    %v44 = vlaneseq
    %v45 = vshrl.u32 %v44, 7
    %v46 = vsub.s32 0, %v45
    %v47 = vrot.slane %v42, %v46
    %v49 = vmul.f32 %v40, %v47
    %v50 = vmul.f32 %v41, %v47
    %51 = vst [vmem:[#allocation5] sm:$0xff] %v49
    %52 = vst [vmem:[#allocation5 + $0x8] sm:$0xff] %v50
    // Predicated region
    $region14: #{tpu_custom_call.1} parent=1 // pred_check
      _
    $region15: #{tpu_custom_call.1} parent=1 // pred_check_branch
      %54 = sbr.rel (0) target = $region17
    $region16: #{tpu_custom_call.1} parent=1 // pred_region
      %s56 = ssub.s32 256, 256
      %57 = vsyncadd [#allocation4], %s56
      %s58 = sshll.u32 [#allocation5], 4
      %s59 = int_to_ptr.vmem [resolvable:$true] %s58
      %64 = dma.vmem_to_hbm [thread:$0]  %s59, 256, %s2, [#allocation4], 128, 128, 8
    $region17: #{tpu_custom_call.1} parent=1 // pred_fallthru
      _
    // Predicated region
    $region18: #{tpu_custom_call.1} parent=1 // pred_check
      _
    $region19: #{tpu_custom_call.1} parent=1 // pred_check_branch
      %66 = sbr.rel (0) target = $region21
    $region20: #{tpu_custom_call.1} parent=1 // pred_region
      %67 = dma.done [#allocation4], 256
    $region21: #{tpu_custom_call.1} parent=1 // pred_fallthru
      _
    %68 = vsyncpa [#allocation3], 1
    %69 = vsyncpa [#allocation4], 1

</llo_original>
